<compile_context>
chip_gen: v6e
topology: v6e:2x2x1
jax: 0.10.0
libtpu: 0.0.40
codegen_flags: <defaults>
</compile_context>

<pallas_src>
import functools

import jax
import jax.numpy as jnp
from jax.experimental import pallas as pl
from jax.experimental.pallas import tpu as pltpu

NEGATIVE_SLOPE = 0.01


def _round_up(v: int, m: int) -> int:
    return ((v + m - 1) // m) * m


def _leaky_relu(v, slope):
    # max(v, slope*v) == where(v > 0, v, slope*v) only for 0 <= slope <= 1.
    if 0.0 <= slope <= 1.0:
        return jnp.maximum(v, v * slope)
    return jnp.where(v > 0, v, v * slope)


def _mm_leaky_direct_kernel(x_ref, w_ref, o_ref, *,
                            negative_slope, num_k, cast_bf16):
    """Accumulates directly into the resident output block (f32 output)."""
    a = x_ref[...]
    b = w_ref[...]
    if cast_bf16:
        a = a.astype(jnp.bfloat16)
        b = b.astype(jnp.bfloat16)
    part = jnp.dot(a, b, preferred_element_type=jnp.float32)

    if num_k == 1:
        # Single-K fast path: one pass over the tile.
        o_ref[...] = _leaky_relu(part, negative_slope).astype(o_ref.dtype)
    else:
        k = pl.program_id(2)

        @pl.when(k == 0)
        def _assign():
            o_ref[...] = part

        @pl.when(k > 0)
        def _accumulate():
            o_ref[...] += part

        @pl.when(k == num_k - 1)
        def _finalize():
            v = o_ref[...]
            o_ref[...] = _leaky_relu(v, negative_slope).astype(o_ref.dtype)


def _mm_leaky_scratch_kernel(x_ref, w_ref, o_ref, acc_ref, *,
                             negative_slope, num_k, cast_bf16):
    """f32 scratch accumulator path (only used for non-f32 output dtypes)."""
    a = x_ref[...]
    b = w_ref[...]
    if cast_bf16:
        a = a.astype(jnp.bfloat16)
        b = b.astype(jnp.bfloat16)
    part = jnp.dot(a, b, preferred_element_type=jnp.float32)

    k = pl.program_id(2)

    @pl.when(k == 0)
    def _assign():
        acc_ref[...] = part

    @pl.when(k > 0)
    def _accumulate():
        acc_ref[...] += part

    @pl.when(k == num_k - 1)
    def _finalize():
        o_ref[...] = _leaky_relu(acc_ref[...], negative_slope).astype(o_ref.dtype)


def matmul_leakyrelu(x, w, *, negative_slope=NEGATIVE_SLOPE,
                     tm=512, tn=512, tk=1024, use_bf16_mxu=False):
    """out = leaky_relu(x @ w).  x: (M, K), w: (K, N) -> (M, N)."""
    M, K = x.shape
    K2, N = w.shape
    assert K == K2, f"inner dims mismatch: {K} vs {K2}"
    assert tm % 8 == 0 and tn % 128 == 0 and tk % 128 == 0, \
        "tile caps must be (8,128)-aligned"

    # --- padding-aware tile selection --------------------------------------
    # M / N: use the full extent when it fits one tile (a block dim equal to
    # the full array dim is exempt from the (8,128) rule); otherwise the
    # aligned cap.  Ragged last blocks are fine: OOB output writes are
    # dropped, and garbage edge rows/cols never reach in-bounds results.
    tm_eff = M if M <= tm else tm
    tn_eff = N if N <= tn else tn

    # K (reduction) genuinely needs zero fill, so avoid padding entirely when
    # K fits a single tile; otherwise take the largest 128-multiple <= tk that
    # divides round_up(K, 128) so any pad is at most 127 elements.
    if K <= tk:
        tk_eff, Kp = K, K
    else:
        Kp = _round_up(K, 128)
        tk_eff = 128
        t = 128
        while t <= tk:
            if Kp % t == 0:
                tk_eff = t
            t += 128

    grid_m = pl.cdiv(M, tm_eff)
    grid_n = pl.cdiv(N, tn_eff)
    grid_k = Kp // tk_eff

    # v7x has two TensorCores: make sure the parallel (M, N) grid has >= 2
    # blocks when the problem is big enough to split cleanly.
    if grid_m * grid_n == 1:
        if tn_eff % 256 == 0:
            tn_eff //= 2
        elif tm_eff % 16 == 0:
            tm_eff //= 2
        grid_m = pl.cdiv(M, tm_eff)
        grid_n = pl.cdiv(N, tn_eff)

    # Zero-fill K only (exact for matmul); M/N are never materialized padded.
    if Kp != K:
        x = jnp.pad(x, ((0, 0), (0, Kp - K)))
        w = jnp.pad(w, ((0, Kp - K), (0, 0)))

    out_dtype = jnp.result_type(x.dtype, w.dtype)
    out_itemsize = jnp.dtype(out_dtype).itemsize
    in_itemsize = jnp.dtype(x.dtype).itemsize

    # Accumulate straight into o_ref when it is already f32; otherwise keep a
    # separate f32 accumulator so multi-step K reductions stay full precision.
    use_scratch = (grid_k > 1) and (out_dtype != jnp.float32)
    if use_scratch:
        kernel = functools.partial(_mm_leaky_scratch_kernel,
                                   negative_slope=negative_slope,
                                   num_k=grid_k, cast_bf16=use_bf16_mxu)
        scratch_shapes = [pltpu.VMEM((tm_eff, tn_eff), jnp.float32)]
    else:
        kernel = functools.partial(_mm_leaky_direct_kernel,
                                   negative_slope=negative_slope,
                                   num_k=grid_k, cast_bf16=use_bf16_mxu)
        scratch_shapes = []

    # Honest cost: x is re-read once per N-block, w once per M-block.
    Me, Ne = grid_m * tm_eff, grid_n * tn_eff
    cost = pl.CostEstimate(
        flops=2 * Me * Ne * Kp,
        transcendentals=0,
        bytes_accessed=int(grid_n * M * Kp * in_itemsize
                           + grid_m * Kp * N * in_itemsize
                           + M * N * out_itemsize),
    )

    # Per-step VMEM (double-buffered inputs/output + optional scratch); set
    # the scoped-VMEM limit explicitly (v5e's default is only 16 MiB).
    vmem_bytes = (2 * (tm_eff * tk_eff + tk_eff * tn_eff) * in_itemsize
                  + 2 * tm_eff * tn_eff * out_itemsize
                  + (tm_eff * tn_eff * 4 if use_scratch else 0))
    vmem_limit = int(min(128 * 2**20, max(32 * 2**20, vmem_bytes * 3 // 2)))

    out = pl.pallas_call(
        kernel,
        out_shape=jax.ShapeDtypeStruct((M, N), out_dtype),
        grid_spec=pltpu.PrefetchScalarGridSpec(
            num_scalar_prefetch=0,
            grid=(grid_m, grid_n, grid_k),
            in_specs=[
                pl.BlockSpec((tm_eff, tk_eff), lambda i, j, k: (i, k)),
                pl.BlockSpec((tk_eff, tn_eff), lambda i, j, k: (k, j)),
            ],
            out_specs=pl.BlockSpec((tm_eff, tn_eff), lambda i, j, k: (i, j)),
            scratch_shapes=scratch_shapes,
        ),
        compiler_params=pltpu.CompilerParams(
            dimension_semantics=("parallel", "parallel", "arbitrary"),
            vmem_limit_bytes=vmem_limit,
        ),
        cost_estimate=cost,
    )(x, w)
    return out


def _reference(x, w, negative_slope=NEGATIVE_SLOPE):
    v1 = x @ w
    return jnp.where(v1 > 0, v1, v1 * negative_slope)


if __name__ == "__main__":
    key = jax.random.PRNGKey(0)
    k1, k2, k3, k4, k5, k6 = jax.random.split(key, 6)

    # Case 1: the module's own shapes (x1 = randn(10, 10), weight 10x10) —
    # exercises the single-tile fast path (grid == (1,1,1), no padding).
    x_s = jax.random.normal(k1, (10, 10), dtype=jnp.float32)
    w_s = jax.random.normal(k2, (10, 10), dtype=jnp.float32)
    o_s = jax.block_until_ready(matmul_leakyrelu(x_s, w_s))
    assert jnp.allclose(o_s, _reference(x_s, w_s), atol=1e-4, rtol=1e-4)

    # Case 2: multi-block N (two parallel output tiles), single K step,
    # K = 640 handled without any padding (tk = K).
    x_m = jax.random.normal(k3, (384, 640), dtype=jnp.float32)
    w_m = jax.random.normal(k4, (640, 512), dtype=jnp.float32)
    o_m = jax.block_until_ready(matmul_leakyrelu(x_m, w_m))
    assert jnp.allclose(o_m, _reference(x_m, w_m), atol=1e-3, rtol=1e-3)

    # Case 3: multi-step K accumulation directly into the resident output
    # block, with non-(8,128)-aligned full-extent M/N tiles (300, 200) and
    # tk = 384 dividing K = 1152 exactly (no padding anywhere).
    x_l = jax.random.normal(k5, (300, 1152), dtype=jnp.float32)
    w_l = jax.random.normal(k6, (1152, 200), dtype=jnp.float32)
    o_l = jax.block_until_ready(matmul_leakyrelu(x_l, w_l))
    assert jnp.allclose(o_l, _reference(x_l, w_l), atol=1e-3, rtol=1e-3)

    print("KERNEL_OK")
</pallas_src>

<mosaic_0001>
module attributes {stable_mosaic.version = 11 : i64} {
  func.func @_mm_leaky_direct_kernel(%arg0: i32, %arg1: i32, %arg2: i32, %arg3: memref<10x10xf32, #tpu.memory_space<vmem>>, %arg4: memref<10x10xf32, #tpu.memory_space<vmem>>, %arg5: memref<10x10xf32, #tpu.memory_space<vmem>>) attributes {dimension_semantics = [#tpu.dimension_semantics<parallel>, #tpu.dimension_semantics<parallel>, #tpu.dimension_semantics<arbitrary>], iteration_bounds = array<i64: 1, 1, 1>, scalar_prefetch = 0 : i64, scratch_operands = 0 : i64, tpu.core_type = #tpu.core_type<tc>, window_params = [{transform_indices = @transform_0, window_bounds = array<i64: 10, 10>}, {transform_indices = @transform_1, window_bounds = array<i64: 10, 10>}, {transform_indices = @transform_2, window_bounds = array<i64: 10, 10>}]} {
    %c0 = arith.constant 0 : index
    %c0_0 = arith.constant 0 : index
    %0 = vector.load %arg3[%c0, %c0_0] : memref<10x10xf32, #tpu.memory_space<vmem>>, vector<10x10xf32>
    %c0_1 = arith.constant 0 : index
    %c0_2 = arith.constant 0 : index
    %1 = vector.load %arg4[%c0_1, %c0_2] : memref<10x10xf32, #tpu.memory_space<vmem>>, vector<10x10xf32>
    %cst = arith.constant dense<0.000000e+00> : vector<10x10xf32>
    %2 = tpu.matmul %0, %1, %cst {dimension_numbers = #tpu.dot_dimension_numbers<[1], [0], [0], [1], [0, 0, 1, 1], [], []>} : vector<10x10xf32>, vector<10x10xf32>, vector<10x10xf32> -> vector<10x10xf32>
    %cst_3 = arith.constant 0.00999999977 : f32
    %3 = vector.broadcast %cst_3 : f32 to vector<10x10xf32>
    %4 = arith.mulf %2, %3 : vector<10x10xf32>
    %5 = arith.maximumf %2, %4 : vector<10x10xf32>
    %c0_4 = arith.constant 0 : index
    %c0_5 = arith.constant 0 : index
    %6 = vector.load %arg5[%c0_4, %c0_5] : memref<10x10xf32, #tpu.memory_space<vmem>>, vector<10x10xf32>
    tpu.vector_store %arg5[%c0_4, %c0_5], %5 {strides = array<i32>} : memref<10x10xf32, #tpu.memory_space<vmem>>, vector<10x10xf32>,
    return
  }
  func.func @transform_0(%arg0: i32, %arg1: i32, %arg2: i32) -> (i32, i32) {
    %c0_i32 = arith.constant 0 : i32
    return %arg0, %arg2 : i32, i32
  }
  func.func @transform_1(%arg0: i32, %arg1: i32, %arg2: i32) -> (i32, i32) {
    %c0_i32 = arith.constant 0 : i32
    return %arg2, %arg1 : i32, i32
  }
  func.func @transform_2(%arg0: i32, %arg1: i32, %arg2: i32) -> (i32, i32) {
    %c0_i32 = arith.constant 0 : i32
    return %arg0, %arg1 : i32, i32
  }
}

</mosaic_0001>

<llo_original>
// kernel: tpu_custom_call.1
$region0: #{tpu_custom_call.1}
  #allocation0 [shape = 'u32[]', space=smem, size = 0x4, offset = 0x4, fixed_abs, tag = 'smem constant byte address 0x4 - core index']
  #allocation1 [shape = 'u32[144,128]{1,0:T(1,128)}', space=vmem, size = 0x12000, scoped, tag = 'internal scratch']
  %s0 = inlined_call_operand.hbm [shape: f32[10,10], index: 0, kind: input, shape index: {}]
  %s1 = inlined_call_operand.hbm [shape: f32[10,10], index: 1, kind: input, shape index: {}]
  %s2 = inlined_call_operand.hbm [shape: f32[10,10], index: 2, kind: output, shape index: {}]
  %s3 = sld [smem:[#allocation0]]
  $region26: #{tpu_custom_call.1} parent=0
    _
  %s5 = ssub.s32 1, %s3
  %s6 = scalar_select 0, %s5, %s3
  $region1: #{tpu_custom_call.1} parent=0
    #allocation2 [shape = 'u8[8192]{0}', space=vmem, size = 0x2000, scoped, tag = 'input window, operand 0, single buffered']
    #allocation3 [shape = 's32[1]{0}', space=sflag, size = 0x4, scoped, tag = 'scoped memory for tpu_custom_call.1']
    #allocation4 [shape = 's32[1]{0}', space=sflag, size = 0x4, scoped, tag = 'scoped memory for tpu_custom_call.1']
    #allocation5 [shape = 'u8[8192]{0}', space=vmem, size = 0x2000, scoped, tag = 'input window, operand 1, single buffered']
    #allocation6 [shape = 's32[1]{0}', space=sflag, size = 0x4, scoped, tag = 'scoped memory for tpu_custom_call.1']
    #allocation7 [shape = 'u8[8192]{0}', space=vmem, size = 0x2000, scoped, tag = 'output window, operand 0, single buffered']
    %7 = vsyncpa [#allocation3], 0
    %8 = vsyncpa [#allocation6], 0
    %9 = vsyncpa [#allocation4], 0
    // Predicated region
    $region2: #{tpu_custom_call.1} parent=1 // pred_check
      _
    $region3: #{tpu_custom_call.1} parent=1 // pred_check_branch
      %11 = sbr.rel (0) target = $region5
    $region4: #{tpu_custom_call.1} parent=1 // pred_region
      %s13 = ssub.s32 256, 256
      %14 = vsyncadd [#allocation3], %s13
      %s15 = sshll.u32 [#allocation2], 4
      %s16 = int_to_ptr.vmem [resolvable:$true] %s15
      %21 = dma.hbm_to_vmem [thread:$0]  %s0, 256, %s16, [#allocation3], 128, 128, 8
    $region5: #{tpu_custom_call.1} parent=1 // pred_fallthru
      _
    // Predicated region
    $region6: #{tpu_custom_call.1} parent=1 // pred_check
      _
    $region7: #{tpu_custom_call.1} parent=1 // pred_check_branch
      %23 = sbr.rel (0) target = $region9
    $region8: #{tpu_custom_call.1} parent=1 // pred_region
      %s25 = ssub.s32 256, 256
      %26 = vsyncadd [#allocation6], %s25
      %s27 = sshll.u32 [#allocation5], 4
      %s28 = int_to_ptr.vmem [resolvable:$true] %s27
      %33 = dma.hbm_to_vmem [thread:$0]  %s1, 256, %s28, [#allocation6], 128, 128, 8
    $region9: #{tpu_custom_call.1} parent=1 // pred_fallthru
      _
    // Predicated region
    $region10: #{tpu_custom_call.1} parent=1 // pred_check
      _
    $region11: #{tpu_custom_call.1} parent=1 // pred_check_branch
      %35 = sbr.rel (0) target = $region13
    $region12: #{tpu_custom_call.1} parent=1 // pred_region
      %36 = dma.done [#allocation3], 256
    $region13: #{tpu_custom_call.1} parent=1 // pred_fallthru
      _
    // Predicated region
    $region14: #{tpu_custom_call.1} parent=1 // pred_check
      _
    $region15: #{tpu_custom_call.1} parent=1 // pred_check_branch
      %38 = sbr.rel (0) target = $region17
    $region16: #{tpu_custom_call.1} parent=1 // pred_region
      %39 = dma.done [#allocation6], 256
    $region17: #{tpu_custom_call.1} parent=1 // pred_fallthru
      _
    %v40 = vld [vmem:[#allocation2] sm:$0xff]
    %v41 = vld [vmem:[#allocation2 + $0x8] sm:$0x3]
    %v42 = vld [vmem:[#allocation5] sm:$0xff]
    %v43 = vld [vmem:[#allocation5 + $0x8] sm:$0x3]
    %vm44 = vcmask 80896
    %v46 = vsel %vm44, %v40, 0
    %v49 = vsel %vm44, %v41, 0
    %vm51 = vcmask 1041408
    %v53 = vsel %vm51, %v43, 0
    %55 = vmatprep.subr.mxu0 0.0
    %56 = vmatpush1.msra.mxu0 0.0
    %57 = vmatprep.subr.mxu0 0.0
    %58 = vmatpush1.msra.mxu0 0.0
    %59 = vmatprep.subr.mxu0 0.0
    %60 = vmatpush1.msra.mxu0 0.0
    %61 = vmatprep.subr.mxu0 0.0
    %62 = vmatpush1.msra.mxu0 0.0
    %63 = vmatprep.subr.mxu0 0.0
    %64 = vmatpush1.msra.mxu0 0.0
    %65 = vmatprep.subr.mxu0 0.0
    %66 = vmatpush1.msra.mxu0 0.0
    %67 = vmatprep.subr.mxu0 0.0
    %68 = vmatpush1.msra.mxu0 0.0
    %69 = vmatprep.subr.mxu0 0.0
    %70 = vmatpush1.msra.mxu0 0.0
    %71 = vmatprep.subr.mxu0 0.0
    %72 = vmatpush1.msra.mxu0 0.0
    %73 = vmatprep.subr.mxu0 0.0
    %74 = vmatpush1.msra.mxu0 0.0
    %75 = vmatprep.subr.mxu0 0.0
    %76 = vmatpush1.msra.mxu0 0.0
    %77 = vmatprep.subr.mxu0 0.0
    %78 = vmatpush1.msra.mxu0 0.0
    %79 = vmatprep.subr.mxu0 0.0
    %80 = vmatpush1.msra.mxu0 0.0
    %81 = vmatprep.subr.mxu0 0.0
    %82 = vmatpush1.msra.mxu0 0.0
    %83 = vmatprep.subr.mxu0 0.0
    %84 = vmatpush1.msra.mxu0 %v53
    %85 = vmatprep.subr.mxu0 0.0
    %86 = vmatpush1.msra.mxu0 %v42
    %87 = vmatprep.subr.mxu0 0.0
    %88 = vmatpush2.msra.mxu0 0.0
    %89 = vmatprep.subr.mxu0 0.0
    %90 = vmatpush2.msra.mxu0 0.0
    %91 = vmatprep.subr.mxu0 0.0
    %92 = vmatpush2.msra.mxu0 0.0
    %93 = vmatprep.subr.mxu0 0.0
    %94 = vmatpush2.msra.mxu0 0.0
    %95 = vmatprep.subr.mxu0 0.0
    %96 = vmatpush2.msra.mxu0 0.0
    %97 = vmatprep.subr.mxu0 0.0
    %98 = vmatpush2.msra.mxu0 0.0
    %99 = vmatprep.subr.mxu0 0.0
    %100 = vmatpush2.msra.mxu0 0.0
    %101 = vmatprep.subr.mxu0 0.0
    %102 = vmatpush2.msra.mxu0 0.0
    %103 = vmatprep.subr.mxu0 0.0
    %104 = vmatpush2.msra.mxu0 0.0
    %105 = vmatprep.subr.mxu0 0.0
    %106 = vmatpush2.msra.mxu0 0.0
    %107 = vmatprep.subr.mxu0 0.0
    %108 = vmatpush2.msra.mxu0 0.0
    %109 = vmatprep.subr.mxu0 0.0
    %110 = vmatpush2.msra.mxu0 0.0
    %111 = vmatprep.subr.mxu0 0.0
    %112 = vmatpush2.msra.mxu0 0.0
    %113 = vmatprep.subr.mxu0 0.0
    %114 = vmatpush2.msra.mxu0 0.0
    %115 = vmatprep.subr.mxu0 0.0
    %116 = vmatpush2.msra.mxu0 0.0
    %117 = vmatprep.subr.mxu0 0.0
    %118 = vmatpush2.msra.mxu0 0.0
    %119 = vmatprep.mubr.f32.mxu0 0.0
    %120 = vmatmul.mubr.f32.gmra.mxu0 %v46
    %v121 = vpop.f32.mrf.mxu0
    %v122 = vadd.f32 0.0, %v121
    %v123 = vpop.f32.mrf.mxu0
    %124 = vmatprep.mubr.f32.mxu0 0.0
    %125 = vmatmul.mubr.f32.gmra.mxu0 %v49
    %v126 = vpop.f32.mrf.mxu0
    %v127 = vadd.f32 0.0, %v126
    %v128 = vpop.f32.mrf.mxu0
    %129 = vdwg.mxu0
    %v130 = vmul.f32 %v122, 0.01
    %v131 = vmul.f32 %v127, 0.01
    %v132 = vmax.f32 %v122, %v130
    %v133 = vmax.f32 %v127, %v131
    %134 = vst.msk [vmem:[#allocation7] sm:$0xff] %vm44, %v132
    %vm135 = vcmask 74752
    %136 = vst.msk [vmem:[#allocation7 + $0x8] sm:$0x3] %vm135, %v133
    // Predicated region
    $region18: #{tpu_custom_call.1} parent=1 // pred_check
      _
    $region19: #{tpu_custom_call.1} parent=1 // pred_check_branch
      %138 = sbr.rel (0) target = $region21
    $region20: #{tpu_custom_call.1} parent=1 // pred_region
      %s140 = ssub.s32 256, 256
      %141 = vsyncadd [#allocation4], %s140
      %s142 = sshll.u32 [#allocation7], 4
      %s143 = int_to_ptr.vmem [resolvable:$true] %s142
      %148 = dma.vmem_to_hbm [thread:$0]  %s143, 256, %s2, [#allocation4], 128, 128, 8
    $region21: #{tpu_custom_call.1} parent=1 // pred_fallthru
      _
    // Predicated region
    $region22: #{tpu_custom_call.1} parent=1 // pred_check
      _
    $region23: #{tpu_custom_call.1} parent=1 // pred_check_branch
      %150 = sbr.rel (0) target = $region25
    $region24: #{tpu_custom_call.1} parent=1 // pred_region
      %151 = dma.done [#allocation4], 256
    $region25: #{tpu_custom_call.1} parent=1 // pred_fallthru
      _
    %152 = vsyncpa [#allocation3], 1
    %153 = vsyncpa [#allocation6], 1
    %154 = vsyncpa [#allocation4], 1

</llo_original>
